<compile_context>
chip_gen: v7x
topology: tpu7x:2x2x1
jax: 0.10.0
libtpu: 0.0.40
codegen_flags: <defaults>
</compile_context>

<pallas_src>
import functools

import jax
import jax.numpy as jnp
from jax.experimental import pallas as pl
from jax.experimental.pallas import tpu as pltpu

_LANE = 128


def _round_up(x, m):
    return (x + m - 1) // m * m


# ----------------------------- Pallas kernel -------------------------------
def _disc_kernel(p_ref, w_ref, b_ref, g_ref, beta_ref, o_ref, acc_ref):
    """One (batch_tile, K-tile) grid step.

    p_ref:    (NB, P, Kt)  bf16 im2col patches (one K tile)
    w_ref:    (Kt, Cp)     bf16 flattened conv-weight tile
    b_ref, g_ref, beta_ref: (1, Cp) f32 conv bias / IN gamma / IN beta
    o_ref:    (NB, P, Cp)  bf16 output (resident across the K axis)
    acc_ref:  (NB, P, Cp)  f32 accumulator scratch
    """
    k_idx = pl.program_id(1)

    @pl.when(k_idx == 0)
    def _():
        acc_ref[...] = jnp.zeros_like(acc_ref)

    nb, pp, kt = p_ref.shape
    cp = w_ref.shape[1]

    # Conv2d == patches @ weight.  Flatten (NB, P) onto the MXU M axis; bf16
    # operands, f32 accumulation into the VMEM scratch.
    p2 = p_ref[...].reshape(nb * pp, kt)
    acc_ref[...] += jnp.dot(
        p2, w_ref[...], preferred_element_type=jnp.float32
    ).reshape(nb, pp, cp)

    # Finalize on the last K tile: bias + InstanceNorm(affine) + GLU.
    @pl.when(k_idx == pl.num_programs(1) - 1)
    def _():
        y = acc_ref[...] + b_ref[...].reshape(1, 1, cp)
        # InstanceNorm2d(affine=True): per-(N, C) stats over the spatial axis.
        # Two-pass (mean-subtracted) variance for numerical stability; biased
        # variance, eps=1e-5 (PyTorch defaults).
        mean = jnp.mean(y, axis=1, keepdims=True)                 # (NB, 1, Cp)
        cen = y - mean
        var = jnp.mean(cen * cen, axis=1, keepdims=True)
        y_hat = cen * jax.lax.rsqrt(var + 1e-5)
        y_hat = y_hat * g_ref[...].reshape(1, 1, cp) + beta_ref[...].reshape(1, 1, cp)
        # GLU (CycleGAN-VC style gated activation): x * sigmoid(x).
        o_ref[...] = (y_hat * jax.nn.sigmoid(y_hat)).astype(o_ref.dtype)


# ------------------------------ glue (JAX) ---------------------------------
def _im2col(x, kh, kw, stride, padding):
    """x: (N, C, H, W) f32 -> bf16 patches (N, P, K), K ordered as (C, KH, KW)."""
    x = x.astype(jnp.bfloat16)          # cast before the gather: half the HBM write
    x = jnp.pad(x, ((0, 0), (0, 0), (padding, padding), (padding, padding)))
    n, c, h, w = x.shape
    h_out = (h - kh) // stride + 1
    w_out = (w - kw) // stride + 1
    cols = []
    for i in range(kh):
        for j in range(kw):
            cols.append(
                x[:, :, i:i + stride * h_out:stride, j:j + stride * w_out:stride])
    p = jnp.stack(cols, axis=0).reshape(kh, kw, n, c, h_out, w_out)
    p = jnp.transpose(p, (2, 4, 5, 3, 0, 1))        # (N, Ho, Wo, C, KH, KW)
    return p.reshape(n, h_out * w_out, c * kh * kw), h_out, w_out


def _choose_c_pad(c_out):
    # 256-aligned output-channel tiles for real layers (v6e/v7x MXU is 2x256^2);
    # a single 128-lane tile for tiny layers (don't double the padded lanes).
    return _round_up(c_out, 256) if c_out >= 128 else _round_up(c_out, _LANE)


def _choose_k_tiling(k, max_k_tile=512):
    # Single full-K tile when small (no HBM zero-pad at all); otherwise
    # 256-aligned K tiles pipelined over the "arbitrary" grid axis.
    if k <= max_k_tile:
        return k, k, 1
    k_pad = _round_up(k, max_k_tile)
    return max_k_tile, k_pad, k_pad // max_k_tile


def _choose_batch_tile(n, p_dim, target_m=512):
    # Largest batch_tile that divides N, keeps the MXU M tile modest
    # (<= ~512 rows so the f32 accumulator / IN temporaries stay comfortable
    # in VMEM), and leaves >= 2 grid steps along the parallel axis so both
    # v7x TensorCores get work and the DMA pipeline exists.
    best = 1
    for bt in range(1, n + 1):
        if n % bt == 0 and bt * p_dim <= target_m and (n // bt >= 2 or n == 1):
            best = bt
    return best


def prepare_conv_params(weight, bias, gamma, beta):
    """One-time parameter prep (flatten / transpose / pad / cast); cache it."""
    c_out, c_in, kh, kw = weight.shape
    k = c_in * kh * kw
    cp = _choose_c_pad(c_out)
    k_tile, k_pad, n_k = _choose_k_tiling(k)
    w_mat = weight.reshape(c_out, k).T.astype(jnp.bfloat16)        # (K, C_out)
    w_mat = jnp.pad(w_mat, ((0, k_pad - k), (0, cp - c_out)))      # (K_pad, Cp)
    b2 = jnp.pad(bias.astype(jnp.float32), (0, cp - c_out)).reshape(1, cp)
    g2 = jnp.pad(gamma.astype(jnp.float32), (0, cp - c_out)).reshape(1, cp)
    bt2 = jnp.pad(beta.astype(jnp.float32), (0, cp - c_out)).reshape(1, cp)
    meta = dict(c_out=c_out, c_in=c_in, kh=kh, kw=kw, k=k,
                k_pad=k_pad, k_tile=k_tile, n_k=n_k, cp=cp)
    return (w_mat, b2, g2, bt2), meta


def down_sample_discriminator(x, params, meta, *, stride, padding,
                              output_layout="NPC"):
    """Forward pass.  x: (N, C_in, H, W).

    output_layout="NPC"  -> ((N, P, Cp) bf16, (H_out, W_out))  [preferred:
                            lane-dense, feeds the next layer directly]
    output_layout="NCHW" -> ((N, C_out, H_out, W_out) bf16, (H_out, W_out))
                            [interface / verification only; extra XLA pass]
    """
    w_mat, b2, g2, bt2 = params
    c_out, kh, kw = meta["c_out"], meta["kh"], meta["kw"]
    k, k_pad, k_tile, n_k, cp = (meta["k"], meta["k_pad"], meta["k_tile"],
                                 meta["n_k"], meta["cp"])

    n = x.shape[0]
    patches, h_out, w_out = _im2col(x, kh, kw, stride, padding)   # (N, P, K) bf16
    p_dim = h_out * w_out
    if k_pad != k:        # only for large-K layers that need multiple K tiles
        patches = jnp.pad(patches, ((0, 0), (0, 0), (0, k_pad - k)))

    batch_tile = _choose_batch_tile(n, p_dim)       # divides n by construction
    grid = (n // batch_tile, n_k)

    # Explicit VMEM budget with headroom (v7x has only 64 MiB physical VMEM;
    # keep double-buffering alive instead of silently de-pipelining).
    need = (2 * batch_tile * p_dim * k_tile * 2      # patch tile, double-buffered
            + 2 * k_tile * cp * 2                    # weight tile, double-buffered
            + 2 * batch_tile * p_dim * cp * 2        # bf16 out, double-buffered
            + 3 * batch_tile * p_dim * cp * 4        # f32 acc + y / y_hat temps
            + 3 * 2 * cp * 4)                        # bias / gamma / beta
    vmem_limit = int(min(max(2 * need, 16 * 2**20), 48 * 2**20))

    cost = pl.CostEstimate(
        flops=2 * n * p_dim * k_pad * cp,
        transcendentals=n * p_dim * cp,              # sigmoid on padded lanes
        bytes_accessed=(patches.size * 2 + w_mat.size * 2 + 3 * cp * 4
                        + n * p_dim * cp * 2),
    )

    out = pl.pallas_call(
        _disc_kernel,
        out_shape=jax.ShapeDtypeStruct((n, p_dim, cp), jnp.bfloat16),
        grid_spec=pltpu.PrefetchScalarGridSpec(
            num_scalar_prefetch=0,
            grid=grid,
            in_specs=[
                pl.BlockSpec((batch_tile, p_dim, k_tile), lambda i, j: (i, 0, j)),
                pl.BlockSpec((k_tile, cp), lambda i, j: (j, 0)),
                pl.BlockSpec((1, cp), lambda i, j: (0, 0)),
                pl.BlockSpec((1, cp), lambda i, j: (0, 0)),
                pl.BlockSpec((1, cp), lambda i, j: (0, 0)),
            ],
            out_specs=pl.BlockSpec((batch_tile, p_dim, cp), lambda i, j: (i, 0, 0)),
            scratch_shapes=[pltpu.VMEM((batch_tile, p_dim, cp), jnp.float32)],
        ),
        compiler_params=pltpu.CompilerParams(
            dimension_semantics=("parallel", "arbitrary"),
            vmem_limit_bytes=vmem_limit,
        ),
        cost_estimate=cost,
    )(patches, w_mat, b2, g2, bt2)

    if output_layout == "NPC":
        return out, (h_out, w_out)
    # NCHW conversion (verification / module interface only).
    out = out[:, :, :c_out].reshape(n, h_out, w_out, c_out)
    return jnp.transpose(out, (0, 3, 1, 2)), (h_out, w_out)


# --------------------------- pure-JAX reference ----------------------------
def _reference(x, weight, bias, gamma, beta, *, stride, padding):
    # Match the kernel's precision: bf16 conv operands with f32 accumulation,
    # InstanceNorm + GLU in f32, bf16 output.
    y = jax.lax.conv_general_dilated(
        x.astype(jnp.bfloat16), weight.astype(jnp.bfloat16),
        window_strides=(stride, stride),
        padding=((padding, padding), (padding, padding)),
        dimension_numbers=("NCHW", "OIHW", "NCHW"),
        preferred_element_type=jnp.float32,
    )
    y = y + bias.reshape(1, -1, 1, 1).astype(jnp.float32)
    mean = jnp.mean(y, axis=(2, 3), keepdims=True)
    var = jnp.mean((y - mean) ** 2, axis=(2, 3), keepdims=True)
    y_hat = (y - mean) * jax.lax.rsqrt(var + 1e-5)
    y_hat = y_hat * gamma.reshape(1, -1, 1, 1) + beta.reshape(1, -1, 1, 1)
    return (y_hat * jax.nn.sigmoid(y_hat)).astype(jnp.bfloat16)


# --------------------------------- main -------------------------------------
if __name__ == "__main__":
    # Small shapes consistent with the discriminator module.
    in_channels, out_channels = 4, 8
    kernel_size, stride, padding = 3, 2, 1
    N, H, W = 2, 16, 16

    key = jax.random.PRNGKey(0)
    kx, kw_, kb, kg, kbeta = jax.random.split(key, 5)

    x = jax.random.normal(kx, (N, in_channels, H, W), dtype=jnp.float32)
    weight = 0.1 * jax.random.normal(
        kw_, (out_channels, in_channels, kernel_size, kernel_size), dtype=jnp.float32)
    bias = 0.1 * jax.random.normal(kb, (out_channels,), dtype=jnp.float32)
    gamma = 1.0 + 0.1 * jax.random.normal(kg, (out_channels,), dtype=jnp.float32)
    beta = 0.1 * jax.random.normal(kbeta, (out_channels,), dtype=jnp.float32)

    # One-time parameter preparation (cached across forward calls).
    params, meta = prepare_conv_params(weight, bias, gamma, beta)

    fwd = jax.jit(functools.partial(
        lambda xx, pp: down_sample_discriminator(
            xx, pp, meta, stride=stride, padding=padding,
            output_layout="NCHW")[0]))
    out = jax.block_until_ready(fwd(x, params))

    ref = jax.block_until_ready(
        _reference(x, weight, bias, gamma, beta, stride=stride, padding=padding))

    assert out.shape == ref.shape == (N, out_channels, 8, 8), out.shape
    assert jnp.allclose(out.astype(jnp.float32), ref.astype(jnp.float32),
                        atol=2e-2, rtol=2e-2), "mismatch vs reference"

    print("KERNEL_OK")
</pallas_src>

<mosaic_0001>
module attributes {stable_mosaic.version = 11 : i64} {
  func.func @_disc_kernel(%arg0: i32, %arg1: i32, %arg2: memref<1x64x36xbf16, #tpu.memory_space<vmem>>, %arg3: memref<36x128xbf16, #tpu.memory_space<vmem>>, %arg4: memref<1x128xf32, #tpu.memory_space<vmem>>, %arg5: memref<1x128xf32, #tpu.memory_space<vmem>>, %arg6: memref<1x128xf32, #tpu.memory_space<vmem>>, %arg7: memref<1x64x128xbf16, #tpu.memory_space<vmem>>, %arg8: memref<1x64x128xf32, #tpu.memory_space<vmem>>) attributes {dimension_semantics = [#tpu.dimension_semantics<parallel>, #tpu.dimension_semantics<arbitrary>], iteration_bounds = array<i64: 2, 1>, scalar_prefetch = 0 : i64, scratch_operands = 1 : i64, tpu.core_type = #tpu.core_type<tc>, window_params = [{transform_indices = @transform_0, window_bounds = array<i64: 1, 64, 36>}, {transform_indices = @transform_1, window_bounds = array<i64: 36, 128>}, {pipeline_mode = #tpu.pipeline_mode<synchronous>, transform_indices = @transform_2, window_bounds = array<i64: 1, 128>}, {pipeline_mode = #tpu.pipeline_mode<synchronous>, transform_indices = @transform_3, window_bounds = array<i64: 1, 128>}, {pipeline_mode = #tpu.pipeline_mode<synchronous>, transform_indices = @transform_4, window_bounds = array<i64: 1, 128>}, {transform_indices = @transform_5, window_bounds = array<i64: 1, 64, 128>}]} {
    %c0_i32 = arith.constant 0 : i32
    %0 = arith.cmpi eq, %arg1, %c0_i32 : i32
    %1 = arith.extui %0 : i1 to i32
    %c0_i32_0 = arith.constant 0 : i32
    %2 = arith.cmpi ne, %1, %c0_i32_0 : i32
    scf.if %2 {
      %cst_13 = arith.constant 0.000000e+00 : f32
      %14 = vector.broadcast %cst_13 : f32 to vector<1x64x128xf32>
      %c0_14 = arith.constant 0 : index
      %c0_15 = arith.constant 0 : index
      %c0_16 = arith.constant 0 : index
      %15 = vector.load %arg8[%c0_14, %c0_15, %c0_16] : memref<1x64x128xf32, #tpu.memory_space<vmem>>, vector<1x64x128xf32>
      tpu.vector_store %arg8[%c0_14, %c0_15, %c0_16], %14 {strides = array<i32>} : memref<1x64x128xf32, #tpu.memory_space<vmem>>, vector<1x64x128xf32>,
    } else {
    }
    %c0 = arith.constant 0 : index
    %c0_1 = arith.constant 0 : index
    %c0_2 = arith.constant 0 : index
    %3 = vector.load %arg2[%c0, %c0_1, %c0_2] : memref<1x64x36xbf16, #tpu.memory_space<vmem>>, vector<1x64x36xbf16>
    %4 = vector.shape_cast %3 : vector<1x64x36xbf16> to vector<64x36xbf16>
    %c0_3 = arith.constant 0 : index
    %c0_4 = arith.constant 0 : index
    %c0_5 = arith.constant 0 : index
    %5 = vector.load %arg8[%c0_3, %c0_4, %c0_5] : memref<1x64x128xf32, #tpu.memory_space<vmem>>, vector<1x64x128xf32>
    %c0_6 = arith.constant 0 : index
    %c0_7 = arith.constant 0 : index
    %6 = vector.load %arg3[%c0_6, %c0_7] : memref<36x128xbf16, #tpu.memory_space<vmem>>, vector<36x128xbf16>
    %cst = arith.constant dense<0.000000e+00> : vector<64x128xf32>
    %7 = tpu.matmul %4, %6, %cst {dimension_numbers = #tpu.dot_dimension_numbers<[1], [0], [0], [1], [0, 0, 1, 1], [], []>} : vector<64x36xbf16>, vector<36x128xbf16>, vector<64x128xf32> -> vector<64x128xf32>
    %8 = vector.shape_cast %7 : vector<64x128xf32> to vector<1x64x128xf32>
    %9 = arith.addf %5, %8 : vector<1x64x128xf32>
    %c0_8 = arith.constant 0 : index
    %c0_9 = arith.constant 0 : index
    %c0_10 = arith.constant 0 : index
    %10 = vector.load %arg8[%c0_8, %c0_9, %c0_10] : memref<1x64x128xf32, #tpu.memory_space<vmem>>, vector<1x64x128xf32>
    tpu.vector_store %arg8[%c0_8, %c0_9, %c0_10], %9 {strides = array<i32>} : memref<1x64x128xf32, #tpu.memory_space<vmem>>, vector<1x64x128xf32>,
    %c0_i32_11 = arith.constant 0 : i32
    %11 = arith.cmpi eq, %arg1, %c0_i32_11 : i32
    %12 = arith.extui %11 : i1 to i32
    %c0_i32_12 = arith.constant 0 : i32
    %13 = arith.cmpi ne, %12, %c0_i32_12 : i32
    scf.if %13 {
      %c0_13 = arith.constant 0 : index
      %c0_14 = arith.constant 0 : index
      %c0_15 = arith.constant 0 : index
      %14 = vector.load %arg8[%c0_13, %c0_14, %c0_15] : memref<1x64x128xf32, #tpu.memory_space<vmem>>, vector<1x64x128xf32>
      %c0_16 = arith.constant 0 : index
      %c0_17 = arith.constant 0 : index
      %15 = vector.load %arg4[%c0_16, %c0_17] : memref<1x128xf32, #tpu.memory_space<vmem>>, vector<1x128xf32>
      %16 = vector.shape_cast %15 : vector<1x128xf32> to vector<1x1x128xf32>
      %17 = vector.broadcast %16 : vector<1x1x128xf32> to vector<1x64x128xf32>
      %18 = arith.addf %14, %17 : vector<1x64x128xf32>
      %cst_18 = arith.constant dense<0.000000e+00> : vector<1x128xf32>
      %19 = vector.multi_reduction <add>, %18, %cst_18 [1] : vector<1x64x128xf32> to vector<1x128xf32>
      %20 = vector.shape_cast %19 : vector<1x128xf32> to vector<1x1x128xf32>
      %cst_19 = arith.constant 6.400000e+01 : f32
      %21 = vector.broadcast %cst_19 : f32 to vector<1x1x128xf32>
      %22 = arith.divf %20, %21 : vector<1x1x128xf32>
      %23 = vector.broadcast %22 : vector<1x1x128xf32> to vector<1x64x128xf32>
      %24 = arith.subf %18, %23 : vector<1x64x128xf32>
      %25 = arith.mulf %24, %24 : vector<1x64x128xf32>
      %cst_20 = arith.constant dense<0.000000e+00> : vector<1x128xf32>
      %26 = vector.multi_reduction <add>, %25, %cst_20 [1] : vector<1x64x128xf32> to vector<1x128xf32>
      %27 = vector.shape_cast %26 : vector<1x128xf32> to vector<1x1x128xf32>
      %cst_21 = arith.constant 6.400000e+01 : f32
      %28 = vector.broadcast %cst_21 : f32 to vector<1x1x128xf32>
      %29 = arith.divf %27, %28 : vector<1x1x128xf32>
      %cst_22 = arith.constant 9.99999974E-6 : f32
      %30 = vector.broadcast %cst_22 : f32 to vector<1x1x128xf32>
      %31 = arith.addf %29, %30 : vector<1x1x128xf32>
      %32 = math.rsqrt %31 : vector<1x1x128xf32>
      %33 = vector.broadcast %32 : vector<1x1x128xf32> to vector<1x64x128xf32>
      %34 = arith.mulf %24, %33 : vector<1x64x128xf32>
      %c0_23 = arith.constant 0 : index
      %c0_24 = arith.constant 0 : index
      %35 = vector.load %arg5[%c0_23, %c0_24] : memref<1x128xf32, #tpu.memory_space<vmem>>, vector<1x128xf32>
      %36 = vector.shape_cast %35 : vector<1x128xf32> to vector<1x1x128xf32>
      %37 = vector.broadcast %36 : vector<1x1x128xf32> to vector<1x64x128xf32>
      %38 = arith.mulf %34, %37 : vector<1x64x128xf32>
      %c0_25 = arith.constant 0 : index
      %c0_26 = arith.constant 0 : index
      %39 = vector.load %arg6[%c0_25, %c0_26] : memref<1x128xf32, #tpu.memory_space<vmem>>, vector<1x128xf32>
      %40 = vector.shape_cast %39 : vector<1x128xf32> to vector<1x1x128xf32>
      %41 = vector.broadcast %40 : vector<1x1x128xf32> to vector<1x64x128xf32>
      %42 = arith.addf %38, %41 : vector<1x64x128xf32>
      %43 = arith.negf %42 : vector<1x64x128xf32>
      %44 = math.exp %43 : vector<1x64x128xf32>
      %cst_27 = arith.constant 1.000000e+00 : f32
      %45 = vector.broadcast %cst_27 : f32 to vector<1x64x128xf32>
      %46 = arith.addf %45, %44 : vector<1x64x128xf32>
      %47 = arith.divf %45, %46 : vector<1x64x128xf32>
      %48 = arith.mulf %42, %47 : vector<1x64x128xf32>
      %49 = arith.truncf %48 : vector<1x64x128xf32> to vector<1x64x128xbf16>
      %c0_28 = arith.constant 0 : index
      %c0_29 = arith.constant 0 : index
      %c0_30 = arith.constant 0 : index
      %50 = vector.load %arg7[%c0_28, %c0_29, %c0_30] : memref<1x64x128xbf16, #tpu.memory_space<vmem>>, vector<1x64x128xbf16>
      tpu.vector_store %arg7[%c0_28, %c0_29, %c0_30], %49 {strides = array<i32>} : memref<1x64x128xbf16, #tpu.memory_space<vmem>>, vector<1x64x128xbf16>,
    } else {
    }
    return
  }
  func.func @transform_0(%arg0: i32, %arg1: i32) -> (i32, i32, i32) {
    %c0_i32 = arith.constant 0 : i32
    %c0_i32_0 = arith.constant 0 : i32
    return %arg0, %c0_i32, %arg1 : i32, i32, i32
  }
  func.func @transform_1(%arg0: i32, %arg1: i32) -> (i32, i32) {
    %c0_i32 = arith.constant 0 : i32
    %c0_i32_0 = arith.constant 0 : i32
    return %arg1, %c0_i32 : i32, i32
  }
  func.func @transform_2(%arg0: i32, %arg1: i32) -> (i32, i32) {
    %c0_i32 = arith.constant 0 : i32
    %c0_i32_0 = arith.constant 0 : i32
    %c0_i32_1 = arith.constant 0 : i32
    return %c0_i32, %c0_i32_0 : i32, i32
  }
  func.func @transform_3(%arg0: i32, %arg1: i32) -> (i32, i32) {
    %c0_i32 = arith.constant 0 : i32
    %c0_i32_0 = arith.constant 0 : i32
    %c0_i32_1 = arith.constant 0 : i32
    return %c0_i32, %c0_i32_0 : i32, i32
  }
  func.func @transform_4(%arg0: i32, %arg1: i32) -> (i32, i32) {
    %c0_i32 = arith.constant 0 : i32
    %c0_i32_0 = arith.constant 0 : i32
    %c0_i32_1 = arith.constant 0 : i32
    return %c0_i32, %c0_i32_0 : i32, i32
  }
  func.func @transform_5(%arg0: i32, %arg1: i32) -> (i32, i32, i32) {
    %c0_i32 = arith.constant 0 : i32
    %c0_i32_0 = arith.constant 0 : i32
    %c0_i32_1 = arith.constant 0 : i32
    return %arg0, %c0_i32, %c0_i32_0 : i32, i32, i32
  }
}

</mosaic_0001>

<llo_original>
// kernel: _lambda_.1
$region0: #{_lambda_.1}
  #allocation0 [shape = 'u32[]', space=smem, size = 0x4, offset = 0x4, fixed_abs, tag = 'smem constant byte address 0x4 - core index']
  #allocation1 [shape = 'u32[144,128]{1,0:T(1,128)}', space=vmem, size = 0x12000, scoped, tag = 'internal scratch']
  #allocation2 [shape = 'f32[1,64,128]{2,1,0:T(8,128)}', space=vmem, size = 0x8000, scoped, tag = 'scratch operand']
  %s0 = inlined_call_operand.vmem [shape: bf16[2,64,36], index: 0, kind: input, shape index: {}]
  %s1 = inlined_call_operand.vmem [shape: bf16[36,128], index: 1, kind: input, shape index: {}]
  %s2 = inlined_call_operand.vmem [shape: f32[1,128], index: 2, kind: input, shape index: {}]
  %s3 = inlined_call_operand.vmem [shape: f32[1,128], index: 3, kind: input, shape index: {}]
  %s4 = inlined_call_operand.vmem [shape: f32[1,128], index: 4, kind: input, shape index: {}]
  %s5 = inlined_call_operand.vmem [shape: bf16[2,64,128], index: 5, kind: output, shape index: {}]
  %s6 = sld [smem:[#allocation0]]
  $region61: #{_lambda_.1} parent=0
    _
  %s8 = ssub.s32 1, %s6
  %s9 = scalar_select 0, %s8, %s6
  loop: start=0, step=1, limit=4
  $region2: #{_lambda_.1} parent=0 // loop_pre_header
    _
  $region3: #{_lambda_.1} parent=0 // loop_header
    %s11 = sphi 0, %s15
    %p12 = scmp.ge.s32.totalorder %s11, 4
    %s18 = sphi 0, %s30
    %s19 = sphi 0, %s26
    %s20 = sphi 0, %s18
    %s21 = sphi 0, %s19
    %s22 = sphi 0, %s20
    %s23 = sphi 0, %s21
    %s35 = sphi 0, %s37
    %s38 = sphi 0, %s35
    %s39 = sphi 0, %s38
    %s55 = sphi 0, %s39
    %s61 = sphi 0, %s63
    %s64 = sphi 0, %s61
    %s65 = sphi 0, %s64
    %s81 = sphi 0, %s65
    %s85 = sphi 0, %s85
    %s87 = sphi 0, %s85
    %s88 = sphi 0, %s87
    %s102 = sphi 0, %s88
    %s106 = sphi 0, %s106
    %s108 = sphi 0, %s106
    %s109 = sphi 0, %s108
    %s123 = sphi 0, %s109
    %s127 = sphi 0, %s127
    %s129 = sphi 0, %s127
    %s130 = sphi 0, %s129
    %s144 = sphi 0, %s130
    %s150 = sphi 0, %s152
    %s153 = sphi 0, %s150
    %s154 = sphi 0, %s153
    %s170 = sphi 0, %s154
  $region4: #{_lambda_.1} parent=0 // loop_header_branch
    %14 = sbr.rel (%p12) target = $region8
  $region5: #{_lambda_.1} parent=0 // loop_body
    %s16 = ssub.s32 %s11, 1
    %s17 = ssub.s32 %s11, 2
    %s24 = sadd.s32 1, %s19
    %p25 = scmp.ge.s32.totalorder %s24, 1
    %s26 = scalar_select %p25, 0, %s24
    %s27 = sadd.s32 1, %s18
    %s28 = scalar_select %p25, %s27, %s18
    %p29 = scmp.ge.s32.totalorder %s28, 2
    %s30 = scalar_select %p29, 0, %s28
    %s31 = ssub.s32 %s18, %s30
    %s32 = ssub.s32 %s19, %s26
    %s33 = sor.u32 %s31, %s32
    %p34 = scmp.eq.s32.totalorder %s33, 0
    %s36 = sadd.s32 %s35, 1
    %s37 = scalar_select %p34, %s35, %s36
    %p40 = pneg %p34
    %p41 = scmp.eq.s32.totalorder %s11, 1
    %p42 = por %p40, %p41
    %p43 = scmp.ne.s32.totalorder %s35, %s38
    %p44 = scmp.eq.s32.totalorder %s11, 0
    %p45 = por %p43, %p44
    %p46 = scmp.ne.s32.totalorder %s35, %s38
    %p47 = scmp.eq.s32.totalorder %s16, 1
    %p48 = por %p46, %p47
    %p49 = scmp.ne.s32.totalorder %s38, %s39
    %p50 = scmp.eq.s32.totalorder %s16, 0
    %p51 = por %p49, %p50
    %p52 = scmp.ne.s32.totalorder %s38, %s39
    %p53 = scmp.eq.s32.totalorder %s17, 1
    %p54 = por %p52, %p53
    %p56 = scmp.ne.s32.totalorder %s39, %s55
    %p57 = scmp.eq.s32.totalorder %s17, 0
    %p58 = por %p56, %p57
    %s59 = ssub.s32 %s19, %s26
    %p60 = scmp.eq.s32.totalorder %s59, 0
    %s62 = sadd.s32 %s61, 1
    %s63 = scalar_select %p60, %s61, %s62
    %p66 = pneg %p60
    %p67 = scmp.eq.s32.totalorder %s11, 1
    %p68 = por %p66, %p67
    %p69 = scmp.ne.s32.totalorder %s61, %s64
    %p70 = scmp.eq.s32.totalorder %s11, 0
    %p71 = por %p69, %p70
    %p72 = scmp.ne.s32.totalorder %s61, %s64
    %p73 = scmp.eq.s32.totalorder %s16, 1
    %p74 = por %p72, %p73
    %p75 = scmp.ne.s32.totalorder %s64, %s65
    %p76 = scmp.eq.s32.totalorder %s16, 0
    %p77 = por %p75, %p76
    %p78 = scmp.ne.s32.totalorder %s64, %s65
    %p79 = scmp.eq.s32.totalorder %s17, 1
    %p80 = por %p78, %p79
    %p82 = scmp.ne.s32.totalorder %s65, %s81
    %p83 = scmp.eq.s32.totalorder %s17, 0
    %p84 = por %p82, %p83
    %s86 = sadd.s32 %s85, 1
    %p89 = scmp.eq.s32.totalorder %s11, 1
    %p90 = scmp.ne.s32.totalorder %s85, %s87
    %p91 = scmp.eq.s32.totalorder %s11, 0
    %p92 = por %p90, %p91
    %p93 = scmp.ne.s32.totalorder %s85, %s87
    %p94 = scmp.eq.s32.totalorder %s16, 1
    %p95 = por %p93, %p94
    %p96 = scmp.ne.s32.totalorder %s87, %s88
    %p97 = scmp.eq.s32.totalorder %s16, 0
    %p98 = por %p96, %p97
    %p99 = scmp.ne.s32.totalorder %s87, %s88
    %p100 = scmp.eq.s32.totalorder %s17, 1
    %p101 = por %p99, %p100
    %p103 = scmp.ne.s32.totalorder %s88, %s102
    %p104 = scmp.eq.s32.totalorder %s17, 0
    %p105 = por %p103, %p104
    %s107 = sadd.s32 %s106, 1
    %p110 = scmp.eq.s32.totalorder %s11, 1
    %p111 = scmp.ne.s32.totalorder %s106, %s108
    %p112 = scmp.eq.s32.totalorder %s11, 0
    %p113 = por %p111, %p112
    %p114 = scmp.ne.s32.totalorder %s106, %s108
    %p115 = scmp.eq.s32.totalorder %s16, 1
    %p116 = por %p114, %p115
    %p117 = scmp.ne.s32.totalorder %s108, %s109
    %p118 = scmp.eq.s32.totalorder %s16, 0
    %p119 = por %p117, %p118
    %p120 = scmp.ne.s32.totalorder %s108, %s109
    %p121 = scmp.eq.s32.totalorder %s17, 1
    %p122 = por %p120, %p121
    %p124 = scmp.ne.s32.totalorder %s109, %s123
    %p125 = scmp.eq.s32.totalorder %s17, 0
    %p126 = por %p124, %p125
    %s128 = sadd.s32 %s127, 1
    %p131 = scmp.eq.s32.totalorder %s11, 1
    %p132 = scmp.ne.s32.totalorder %s127, %s129
    %p133 = scmp.eq.s32.totalorder %s11, 0
    %p134 = por %p132, %p133
    %p135 = scmp.ne.s32.totalorder %s127, %s129
    %p136 = scmp.eq.s32.totalorder %s16, 1
    %p137 = por %p135, %p136
    %p138 = scmp.ne.s32.totalorder %s129, %s130
    %p139 = scmp.eq.s32.totalorder %s16, 0
    %p140 = por %p138, %p139
    %p141 = scmp.ne.s32.totalorder %s129, %s130
    %p142 = scmp.eq.s32.totalorder %s17, 1
    %p143 = por %p141, %p142
    %p145 = scmp.ne.s32.totalorder %s130, %s144
    %p146 = scmp.eq.s32.totalorder %s17, 0
    %p147 = por %p145, %p146
    %s148 = ssub.s32 %s18, %s30
    %p149 = scmp.eq.s32.totalorder %s148, 0
    %s151 = sadd.s32 %s150, 1
    %s152 = scalar_select %p149, %s150, %s151
    %p155 = pneg %p149
    %p156 = scmp.eq.s32.totalorder %s11, 1
    %p157 = por %p155, %p156
    %p158 = scmp.ne.s32.totalorder %s150, %s153
    %p159 = scmp.eq.s32.totalorder %s11, 0
    %p160 = por %p158, %p159
    %p161 = scmp.ne.s32.totalorder %s150, %s153
    %p162 = scmp.eq.s32.totalorder %s16, 1
    %p163 = por %p161, %p162
    %p164 = scmp.ne.s32.totalorder %s153, %s154
    %p165 = scmp.eq.s32.totalorder %s16, 0
    %p166 = por %p164, %p165
    %p167 = scmp.ne.s32.totalorder %s153, %s154
    %p168 = scmp.eq.s32.totalorder %s17, 1
    %p169 = por %p167, %p168
    %p171 = scmp.ne.s32.totalorder %s154, %s170
    %p172 = scmp.eq.s32.totalorder %s17, 0
    %p173 = por %p171, %p172
    %p174 = scmp.le.s32.totalorder 1, %s11
    %p175 = scmp.lt.s32.totalorder %s11, 3
    %p176 = pnand %p174, %p175
    %p177 = pneg %p176
    // Predicated region
    $region9: #{_lambda_.1} parent=5 // pred_check
      _
    $region10: #{_lambda_.1} parent=5 // pred_check_branch
      %179 = sbr.rel (%p176) target = $region12
    $region11: #{_lambda_.1} parent=5 // pred_region
      %s180 = ssub.s32 %s11, 1
      // Predicated region
      $region13: #{_lambda_.1} parent=11 // pred_check
        %p181 = pneg %p77
      $region14: #{_lambda_.1} parent=11 // pred_check_branch
        %183 = sbr.rel (%p181) target = $region16
      $region15: #{_lambda_.1} parent=11 // pred_region
        %s184 = smul.u32 5, %s21
        %p185 = scmp.lt.s32.totalorder %s184, 4
        %s186 = scalar_select %p185, %s184, 4
        %s187 = smul.addr %s186, 4
        %s188 = scalar_lea.vmem %s1, %s187
        %s189 = smul.u32 5, %s21
      $region16: #{_lambda_.1} parent=11 // pred_fallthru
        _
      // Predicated region
      $region17: #{_lambda_.1} parent=11 // pred_check
        %p190 = pneg %p98
      $region18: #{_lambda_.1} parent=11 // pred_check_branch
        %192 = sbr.rel (%p190) target = $region20
      $region19: #{_lambda_.1} parent=11 // pred_region
        _
      $region20: #{_lambda_.1} parent=11 // pred_fallthru
        _
      // Predicated region
      $region21: #{_lambda_.1} parent=11 // pred_check
        %p193 = pneg %p119
      $region22: #{_lambda_.1} parent=11 // pred_check_branch
        %195 = sbr.rel (%p193) target = $region24
      $region23: #{_lambda_.1} parent=11 // pred_region
        _
      $region24: #{_lambda_.1} parent=11 // pred_fallthru
        _
      // Predicated region
      $region25: #{_lambda_.1} parent=11 // pred_check
        %p196 = pneg %p140
      $region26: #{_lambda_.1} parent=11 // pred_check_branch
        %198 = sbr.rel (%p196) target = $region28
      $region27: #{_lambda_.1} parent=11 // pred_region
        _
      $region28: #{_lambda_.1} parent=11 // pred_fallthru
        _
    $region12: #{_lambda_.1} parent=5 // pred_fallthru
      _
    %p199 = scmp.lt.s32.totalorder %s11, 2
    // Predicated region
    $region29: #{_lambda_.1} parent=5 // pred_check
      %p200 = pneg %p199
    $region30: #{_lambda_.1} parent=5 // pred_check_branch
      %202 = sbr.rel (%p200) target = $region32
    $region31: #{_lambda_.1} parent=5 // pred_region
      // Predicated region
      $region33: #{_lambda_.1} parent=31 // pred_check
        %p203 = pneg %p45
      $region34: #{_lambda_.1} parent=31 // pred_check_branch
        %205 = sbr.rel (%p203) target = $region36
      $region35: #{_lambda_.1} parent=31 // pred_region
        %p206 = scmp.lt.s32.totalorder %s18, 1
        %s207 = scalar_select %p206, %s18, 1
        %p208 = scmp.lt.s32.totalorder %s19, 0
        %s209 = scalar_select %p208, %s19, 0
        %s210 = smul.addr %s207, 8
        %s211 = sadd.s32 %s209, %s210
        %s212 = smul.addr %s211, 4
        %s213 = scalar_lea.vmem %s0, %s212
      $region36: #{_lambda_.1} parent=31 // pred_fallthru
        _
    $region32: #{_lambda_.1} parent=5 // pred_fallthru
      _
    %p214 = scmp.le.s32.totalorder 1, %s11
    %p215 = scmp.lt.s32.totalorder %s11, 3
    %p216 = pnand %p214, %p215
    %p217 = pneg %p216
    // Predicated region
    $region37: #{_lambda_.1} parent=5 // pred_check
      _
    $region38: #{_lambda_.1} parent=5 // pred_check_branch
      %219 = sbr.rel (%p216) target = $region40
    $region39: #{_lambda_.1} parent=5 // pred_region
      %s220 = ssub.s32 %s11, 1
      %p221 = scmp.lt.s32.totalorder %s20, 1
      %s222 = scalar_select %p221, %s20, 1
      %p223 = scmp.lt.s32.totalorder %s21, 0
      %s224 = scalar_select %p223, %s21, 0
      %s225 = smul.addr %s222, 8
      %s226 = sadd.s32 %s224, %s225
      %s227 = smul.addr %s226, 4
      %s228 = scalar_lea.vmem %s0, %s227
      %p229 = pneg %p51
      %p230 = pneg %p48
      %s231 = smul.u32 5, %s21
      %p232 = scmp.lt.s32.totalorder %s231, 4
      %s233 = scalar_select %p232, %s231, 4
      %s234 = smul.addr %s233, 4
      %s235 = scalar_lea.vmem %s1, %s234
      %p236 = pneg %p77
      %p237 = pneg %p74
      %p238 = pneg %p98
      %p239 = pneg %p95
      %p240 = pneg %p119
      %p241 = pneg %p116
      %p242 = pneg %p140
      %p243 = pneg %p137
      %p244 = pneg %p166
      %p245 = pneg %p163
      %p246 = scmp.lt.s32.totalorder %s20, 1
      %s247 = scalar_select %p246, %s20, 1
      %s248 = smul.addr %s247, 8
      %s249 = smul.addr %s248, 4
      %s250 = scalar_lea.vmem %s5, %s249
      %p251 = scmp.lt.s32.totalorder %s20, 1
      %s252 = scalar_select %p251, %s20, 1
      %p253 = scmp.lt.s32.totalorder %s21, 0
      %s254 = scalar_select %p253, %s21, 0
      %s255 = smul.addr %s252, 8
      %s256 = sadd.s32 %s254, %s255
      %s257 = smul.addr %s256, 4
      %s258 = scalar_lea.vmem %s0, %s257
      %s259 = smul.u32 5, %s21
      %p260 = scmp.lt.s32.totalorder %s259, 4
      %s261 = scalar_select %p260, %s259, 4
      %s262 = smul.addr %s261, 4
      %s263 = scalar_lea.vmem %s1, %s262
      %s264 = smul.u32 5, %s21
      %p265 = scmp.lt.s32.totalorder %s20, 1
      %s266 = scalar_select %p265, %s20, 1
      %s267 = smul.addr %s266, 8
      %s268 = smul.addr %s267, 4
      %s269 = scalar_lea.vmem %s5, %s268
      %p271 = scmp.eq.s32.totalorder %s21, 0
      // Predicated region
      $region41: #{_lambda_.1} parent=39 // pred_check
        %p272 = pneg %p271
      $region42: #{_lambda_.1} parent=39 // pred_check_branch
        %274 = sbr.rel (%p272) target = $region44
      $region43: #{_lambda_.1} parent=39 // pred_region
        %275 = vst [vmem:[#allocation2] sm:$0xff] 0.0
        %276 = vst [vmem:[#allocation2 + $0x8] sm:$0xff] 0.0
        %277 = vst [vmem:[#allocation2 + $0x10] sm:$0xff] 0.0
        %278 = vst [vmem:[#allocation2 + $0x18] sm:$0xff] 0.0
        %279 = vst [vmem:[#allocation2 + $0x20] sm:$0xff] 0.0
        %280 = vst [vmem:[#allocation2 + $0x28] sm:$0xff] 0.0
        %281 = vst [vmem:[#allocation2 + $0x30] sm:$0xff] 0.0
        %282 = vst [vmem:[#allocation2 + $0x38] sm:$0xff] 0.0
      $region44: #{_lambda_.1} parent=39 // pred_fallthru
        _
      %v283 = vld [vmem:[%s258] sm:$0xf]
      %v284 = vld [vmem:[%s258 + $0x4] sm:$0xf]
      %v285 = vld [vmem:[%s258 + $0x8] sm:$0xf]
      %v286 = vld [vmem:[%s258 + $0xc] sm:$0xf]
      %v287 = vld [vmem:[%s258 + $0x10] sm:$0xf]
      %v288 = vld [vmem:[%s258 + $0x14] sm:$0xf]
      %v289 = vld [vmem:[%s258 + $0x18] sm:$0xf]
      %v290 = vld [vmem:[%s258 + $0x1c] sm:$0xf]
      %v291 = vld [vmem:[#allocation2] sm:$0xff]
      %v292 = vld [vmem:[#allocation2 + $0x8] sm:$0xff]
      %v293 = vld [vmem:[#allocation2 + $0x10] sm:$0xff]
      %v294 = vld [vmem:[#allocation2 + $0x18] sm:$0xff]
      %v295 = vld [vmem:[#allocation2 + $0x20] sm:$0xff]
      %v296 = vld [vmem:[#allocation2 + $0x28] sm:$0xff]
      %v297 = vld [vmem:[#allocation2 + $0x30] sm:$0xff]
      %v298 = vld [vmem:[#allocation2 + $0x38] sm:$0xff]
      %v299 = vld [vmem:[%s263] sm:$0xf]
      %v300 = vld [vmem:[%s263 + $0x4] sm:$0xf]
      %v301 = vld [vmem:[%s263 + $0x8] sm:$0xf]
      %v302 = vld [vmem:[%s263 + $0xc] sm:$0xf]
      %v303 = vld [vmem:[%s263 + $0x10] sm:$0x3]
      %v312 = vunpack.c.l.b16 %v283
      %v313 = vunpack.c.l.b16 %v284
      %v314 = vunpack.c.l.b16 %v285
      %v315 = vunpack.c.l.b16 %v286
      %v316 = vunpack.c.l.b16 %v287
      %v317 = vunpack.c.l.b16 %v288
      %v318 = vunpack.c.l.b16 %v289
      %v319 = vunpack.c.l.b16 %v290
      %v320 = vpack.c.b16 %v313, %v312
      %v321 = vpack.c.b16 %v315, %v314
      %v322 = vpack.c.b16 %v317, %v316
      %v323 = vpack.c.b16 %v319, %v318
      %v329 = vunpack.c.l.b16 %v299
      %v330 = vunpack.c.l.b16 %v300
      %v331 = vunpack.c.l.b16 %v301
      %v332 = vunpack.c.l.b16 %v302
      %v333 = vunpack.c.l.b16 %v303
      %v334 = vpack.c.b16 %v330, %v329
      %v335 = vpack.c.b16 %v332, %v331
      %v336 = vpack.c.b16 %v333, %v333
      %vm339 = vcmask 293888
      %v341 = vsel %vm339, %v320, 0
      %v344 = vsel %vm339, %v321, 0
      %v347 = vsel %vm339, %v322, 0
      %v350 = vsel %vm339, %v323, 0
      %vm352 = vcmask 1041408
      %v354 = vsel %vm352, %v336, 0
      %356 = vmatprep.subr.bf16.mxu0 0
      %357 = vmatpush1.bf16.msra.mxu0 %v334
      %358 = vmatprep.subr.bf16.mxu0 0
      %359 = vmatpush1.bf16.msra.mxu0 %v335
      %360 = vmatprep.subr.bf16.mxu0 0
      %361 = vmatpush1.bf16.msra.mxu0 %v354
      %362 = vmatprep.subr.bf16.mxu0 0
      %363 = vmatpush1.bf16.msra.mxu0 0
      %364 = vmatprep.subr.bf16.mxu0 0
      %365 = vmatpush1.bf16.msra.mxu0 0
      %366 = vmatprep.subr.bf16.mxu0 0
      %367 = vmatpush1.bf16.msra.mxu0 0
      %368 = vmatprep.subr.bf16.mxu0 0
      %369 = vmatpush1.bf16.msra.mxu0 0
      %370 = vmatprep.subr.bf16.mxu0 0
      %371 = vmatpush1.bf16.msra.mxu0 0
      %372 = vmatprep.subr.bf16.mxu0 0
      %373 = vmatpush1.bf16.msra.mxu0 0
      %374 = vmatprep.subr.bf16.mxu0 0
      %375 = vmatpush1.bf16.msra.mxu0 0
      %376 = vmatprep.subr.bf16.mxu0 0
      %377 = vmatpush1.bf16.msra.mxu0 0
      %378 = vmatprep.subr.bf16.mxu0 0
      %379 = vmatpush1.bf16.msra.mxu0 0
      %380 = vmatprep.subr.bf16.mxu0 0
      %381 = vmatpush1.bf16.msra.mxu0 0
      %382 = vmatprep.subr.bf16.mxu0 0
      %383 = vmatpush1.bf16.msra.mxu0 0
      %384 = vmatprep.subr.bf16.mxu0 0
      %385 = vmatpush1.bf16.msra.mxu0 0
      %386 = vmatprep.subr.bf16.mxu0 0
      %387 = vmatpush1.bf16.msra.mxu0 0
      %388 = vmatprep.mubr.bf16.mxu0 0
      %389 = vmatmul.mubr.bf16.gmra.mrb[0].mxu0 %v341
      %v390 = vpop.f32.mrb[0].mxu0
      %v391 = vadd.f32 0.0, %v390
      %v392 = vpop.f32.mrb[0].mxu0
      %v393 = vpop.f32.mrb[0].mxu0
      %v394 = vadd.f32 0.0, %v393
      %v395 = vpop.f32.mrb[0].mxu0
      %396 = vmatprep.mubr.bf16.mxu0 0
      %397 = vmatmul.mubr.bf16.gmra.mrb[0].mxu0 %v344
      %v398 = vpop.f32.mrb[0].mxu0
      %v399 = vadd.f32 0.0, %v398
      %v400 = vpop.f32.mrb[0].mxu0
      %v401 = vpop.f32.mrb[0].mxu0
      %v402 = vadd.f32 0.0, %v401
      %v403 = vpop.f32.mrb[0].mxu0
      %404 = vmatprep.mubr.bf16.mxu0 0
      %405 = vmatmul.mubr.bf16.gmra.mrb[0].mxu0 %v347
      %v406 = vpop.f32.mrb[0].mxu0
      %v407 = vadd.f32 0.0, %v406
      %v408 = vpop.f32.mrb[0].mxu0
      %v409 = vpop.f32.mrb[0].mxu0
      %v410 = vadd.f32 0.0, %v409
      %v411 = vpop.f32.mrb[0].mxu0
      %412 = vmatprep.mubr.bf16.mxu0 0
      %413 = vmatmul.mubr.bf16.gmra.mrb[0].mxu0 %v350
      %v414 = vpop.f32.mrb[0].mxu0
      %v415 = vadd.f32 0.0, %v414
      %v416 = vpop.f32.mrb[0].mxu0
      %v417 = vpop.f32.mrb[0].mxu0
      %v418 = vadd.f32 0.0, %v417
      %v419 = vpop.f32.mrb[0].mxu0
      %420 = vdwg.mxu0
      %v421 = vadd.f32 %v291, %v391
      %v422 = vadd.f32 %v292, %v394
      %v423 = vadd.f32 %v293, %v399
      %v424 = vadd.f32 %v294, %v402
      %v425 = vadd.f32 %v295, %v407
      %v426 = vadd.f32 %v296, %v410
      %v427 = vadd.f32 %v297, %v415
      %v428 = vadd.f32 %v298, %v418
      %429 = vst [vmem:[#allocation2] sm:$0xff] %v421
      %430 = vst [vmem:[#allocation2 + $0x8] sm:$0xff] %v422
      %431 = vst [vmem:[#allocation2 + $0x10] sm:$0xff] %v423
      %432 = vst [vmem:[#allocation2 + $0x18] sm:$0xff] %v424
      %433 = vst [vmem:[#allocation2 + $0x20] sm:$0xff] %v425
      %434 = vst [vmem:[#allocation2 + $0x28] sm:$0xff] %v426
      %435 = vst [vmem:[#allocation2 + $0x30] sm:$0xff] %v427
      %436 = vst [vmem:[#allocation2 + $0x38] sm:$0xff] %v428
      // Predicated region
      $region45: #{_lambda_.1} parent=39 // pred_check
        %p437 = pneg %p271
      $region46: #{_lambda_.1} parent=39 // pred_check_branch
        %439 = sbr.rel (%p437) target = $region48
      $region47: #{_lambda_.1} parent=39 // pred_region
        %v440 = vld [vmem:[#allocation2] sm:$0xff]
        %v441 = vld [vmem:[#allocation2 + $0x8] sm:$0xff]
        %v442 = vld [vmem:[#allocation2 + $0x10] sm:$0xff]
        %v443 = vld [vmem:[#allocation2 + $0x18] sm:$0xff]
        %v444 = vld [vmem:[#allocation2 + $0x20] sm:$0xff]
        %v445 = vld [vmem:[#allocation2 + $0x28] sm:$0xff]
        %v446 = vld [vmem:[#allocation2 + $0x30] sm:$0xff]
        %v447 = vld [vmem:[#allocation2 + $0x38] sm:$0xff]
        %v448 = vld [vmem:[%s2] sm:$0x1]
        %v450 = vlaneseq
        %v451 = vshrl.u32 %v450, 7
        %v452 = vsub.s32 0, %v451
        %v453 = vrot.slane %v448, %v452
        %v455 = vadd.f32 %v440, %v453
        %v456 = vadd.f32 %v441, %v453
        %v457 = vadd.f32 %v442, %v453
        %v458 = vadd.f32 %v443, %v453
        %v459 = vadd.f32 %v444, %v453
        %v460 = vadd.f32 %v445, %v453
        %v461 = vadd.f32 %v446, %v453
        %v462 = vadd.f32 %v447, %v453
        %v463 = vadd.f32 %v455, %v456
        %v464 = vadd.f32 %v463, %v457
        %v465 = vadd.f32 %v464, %v458
        %v466 = vadd.f32 %v465, %v459
        %v467 = vadd.f32 %v466, %v460
        %v468 = vadd.f32 %v467, %v461
        %v469 = vadd.f32 %v468, %v462
        %v470 = vrot.slane %v469, 4
        %v471 = vadd.f32 %v469, %v470
        %v472 = vrot.slane %v471, 2
        %v473 = vadd.f32 %v471, %v472
        %v474 = vrot.slane %v473, 1
        %v475 = vadd.f32 %v473, %v474
        %v476 = vrcp.pop 64.0
        %v477 = vmul.f32 %v475, %v476
        %v478 = vsub.f32 %v455, %v477
        %v479 = vsub.f32 %v456, %v477
        %v480 = vsub.f32 %v457, %v477
        %v481 = vsub.f32 %v458, %v477
        %v482 = vsub.f32 %v459, %v477
        %v483 = vsub.f32 %v460, %v477
        %v484 = vsub.f32 %v461, %v477
        %v485 = vsub.f32 %v462, %v477
        %v486 = vmul.f32 %v478, %v478
        %v487 = vmul.f32 %v479, %v479
        %v488 = vmul.f32 %v480, %v480
        %v489 = vmul.f32 %v481, %v481
        %v490 = vmul.f32 %v482, %v482
        %v491 = vmul.f32 %v483, %v483
        %v492 = vmul.f32 %v484, %v484
        %v493 = vmul.f32 %v485, %v485
        %v494 = vadd.f32 %v486, %v487
        %v495 = vadd.f32 %v494, %v488
        %v496 = vadd.f32 %v495, %v489
        %v497 = vadd.f32 %v496, %v490
        %v498 = vadd.f32 %v497, %v491
        %v499 = vadd.f32 %v498, %v492
        %v500 = vadd.f32 %v499, %v493
        %v501 = vrot.slane %v500, 4
        %v502 = vadd.f32 %v500, %v501
        %v503 = vrot.slane %v502, 2
        %v504 = vadd.f32 %v502, %v503
        %v505 = vrot.slane %v504, 1
        %v506 = vadd.f32 %v504, %v505
        %v507 = vmul.f32 %v506, %v476
        %v508 = vadd.f32 %v507, 1e-05
        %v509 = vrsqrt.pop %v508
        %v510 = vmul.f32 %v478, %v509
        %v511 = vmul.f32 %v479, %v509
        %v512 = vmul.f32 %v480, %v509
        %v513 = vmul.f32 %v481, %v509
        %v514 = vmul.f32 %v482, %v509
        %v515 = vmul.f32 %v483, %v509
        %v516 = vmul.f32 %v484, %v509
        %v517 = vmul.f32 %v485, %v509
        %v518 = vld [vmem:[%s3] sm:$0x1]
        %v520 = vlaneseq
        %v521 = vshrl.u32 %v520, 7
        %v522 = vsub.s32 0, %v521
        %v523 = vrot.slane %v518, %v522
        %v525 = vmul.f32 %v510, %v523
        %v526 = vmul.f32 %v511, %v523
        %v527 = vmul.f32 %v512, %v523
        %v528 = vmul.f32 %v513, %v523
        %v529 = vmul.f32 %v514, %v523
        %v530 = vmul.f32 %v515, %v523
        %v531 = vmul.f32 %v516, %v523
        %v532 = vmul.f32 %v517, %v523
        %v533 = vld [vmem:[%s4] sm:$0x1]
        %v535 = vlaneseq
        %v536 = vshrl.u32 %v535, 7
        %v537 = vsub.s32 0, %v536
        %v538 = vrot.slane %v533, %v537
        %v540 = vadd.f32 %v525, %v538
        %v541 = vadd.f32 %v526, %v538
        %v542 = vadd.f32 %v527, %v538
        %v543 = vadd.f32 %v528, %v538
        %v544 = vadd.f32 %v529, %v538
        %v545 = vadd.f32 %v530, %v538
        %v546 = vadd.f32 %v531, %v538
        %v547 = vadd.f32 %v532, %v538
        %v548 = vxor.u32 %v540, 2147483648
        %v549 = vxor.u32 %v541, 2147483648
        %v550 = vxor.u32 %v542, 2147483648
        %v551 = vxor.u32 %v543, 2147483648
        %v552 = vxor.u32 %v544, 2147483648
        %v553 = vxor.u32 %v545, 2147483648
        %v554 = vxor.u32 %v546, 2147483648
        %v555 = vxor.u32 %v547, 2147483648
        %v556 = vmul.f32 %v548, 1.442695
        %v557 = vpow.pop %v556
        %v558 = vmul.f32 %v549, 1.442695
        %v559 = vpow.pop %v558
        %v560 = vmul.f32 %v550, 1.442695
        %v561 = vpow.pop %v560
        %v562 = vmul.f32 %v551, 1.442695
        %v563 = vpow.pop %v562
        %v564 = vmul.f32 %v552, 1.442695
        %v565 = vpow.pop %v564
        %v566 = vmul.f32 %v553, 1.442695
        %v567 = vpow.pop %v566
        %v568 = vmul.f32 %v554, 1.442695
        %v569 = vpow.pop %v568
        %v570 = vmul.f32 %v555, 1.442695
        %v571 = vpow.pop %v570
        %v572 = vadd.f32 %v557, 1.0
        %v573 = vadd.f32 %v559, 1.0
        %v574 = vadd.f32 %v561, 1.0
        %v575 = vadd.f32 %v563, 1.0
        %v576 = vadd.f32 %v565, 1.0
        %v577 = vadd.f32 %v567, 1.0
        %v578 = vadd.f32 %v569, 1.0
        %v579 = vadd.f32 %v571, 1.0
        %v580 = vrcp.pop %v572
        %v581 = vmul.f32 1.0, %v580
        %v582 = vrcp.pop %v573
        %v583 = vmul.f32 1.0, %v582
        %v584 = vrcp.pop %v574
        %v585 = vmul.f32 1.0, %v584
        %v586 = vrcp.pop %v575
        %v587 = vmul.f32 1.0, %v586
        %v588 = vrcp.pop %v576
        %v589 = vmul.f32 1.0, %v588
        %v590 = vrcp.pop %v577
        %v591 = vmul.f32 1.0, %v590
        %v592 = vrcp.pop %v578
        %v593 = vmul.f32 1.0, %v592
        %v594 = vrcp.pop %v579
        %v595 = vmul.f32 1.0, %v594
        %v596 = vmul.f32 %v540, %v581
        %v597 = vmul.f32 %v541, %v583
        %v598 = vmul.f32 %v542, %v585
        %v599 = vmul.f32 %v543, %v587
        %v600 = vmul.f32 %v544, %v589
        %v601 = vmul.f32 %v545, %v591
        %v602 = vmul.f32 %v546, %v593
        %v603 = vmul.f32 %v547, %v595
        %v604 = vpack.c.bf16 %v597, %v596
        %v605 = vpack.c.bf16 %v599, %v598
        %v606 = vpack.c.bf16 %v601, %v600
        %v607 = vpack.c.bf16 %v603, %v602
        %v612 = vunpack.c.l.b16 %v604
        %v613 = vunpack.c.h.b16 %v604
        %v614 = vunpack.c.l.b16 %v605
        %v615 = vunpack.c.h.b16 %v605
        %v616 = vunpack.c.l.b16 %v606
        %v617 = vunpack.c.h.b16 %v606
        %v618 = vunpack.c.l.b16 %v607
        %v619 = vunpack.c.h.b16 %v607
        %v620 = vpack.c.b16 %v612, %v612
        %v621 = vpack.c.b16 %v613, %v613
        %v622 = vpack.c.b16 %v614, %v614
        %v623 = vpack.c.b16 %v615, %v615
        %v624 = vpack.c.b16 %v616, %v616
        %v625 = vpack.c.b16 %v617, %v617
        %v626 = vpack.c.b16 %v618, %v618
        %v627 = vpack.c.b16 %v619, %v619
        %636 = vst [vmem:[%s269] sm:$0xf] %v620
        %637 = vst [vmem:[%s269 + $0x4] sm:$0xf] %v621
        %638 = vst [vmem:[%s269 + $0x8] sm:$0xf] %v622
        %639 = vst [vmem:[%s269 + $0xc] sm:$0xf] %v623
        %640 = vst [vmem:[%s269 + $0x10] sm:$0xf] %v624
        %641 = vst [vmem:[%s269 + $0x14] sm:$0xf] %v625
        %642 = vst [vmem:[%s269 + $0x18] sm:$0xf] %v626
        %643 = vst [vmem:[%s269 + $0x1c] sm:$0xf] %v627
      $region48: #{_lambda_.1} parent=39 // pred_fallthru
        _
      %p644 = scmp.lt.s32.totalorder %s20, 1
      %s645 = scalar_select %p644, %s20, 1
      %s646 = smul.addr %s645, 8
      %s647 = smul.addr %s646, 4
      %s648 = scalar_lea.vmem %s5, %s647
      // Predicated region
      $region49: #{_lambda_.1} parent=39 // pred_check
        %p649 = pneg %p163
      $region50: #{_lambda_.1} parent=39 // pred_check_branch
        %651 = sbr.rel (%p649) target = $region52
      $region51: #{_lambda_.1} parent=39 // pred_region
        _
      $region52: #{_lambda_.1} parent=39 // pred_fallthru
        _
    $region40: #{_lambda_.1} parent=5 // pred_fallthru
      _
    %p652 = scmp.le.s32.totalorder 2, %s11
    // Predicated region
    $region53: #{_lambda_.1} parent=5 // pred_check
      %p653 = pneg %p652
    $region54: #{_lambda_.1} parent=5 // pred_check_branch
      %655 = sbr.rel (%p653) target = $region56
    $region55: #{_lambda_.1} parent=5 // pred_region
      %s656 = ssub.s32 %s11, 2
      // Predicated region
      $region57: #{_lambda_.1} parent=55 // pred_check
        %p657 = pneg %p169
      $region58: #{_lambda_.1} parent=55 // pred_check_branch
        %659 = sbr.rel (%p657) target = $region60
      $region59: #{_lambda_.1} parent=55 // pred_region
        %p660 = scmp.lt.s32.totalorder %s22, 1
        %s661 = scalar_select %p660, %s22, 1
        %s662 = smul.addr %s661, 8
        %s663 = smul.addr %s662, 4
        %s664 = scalar_lea.vmem %s5, %s663
      $region60: #{_lambda_.1} parent=55 // pred_fallthru
        _
    $region56: #{_lambda_.1} parent=5 // pred_fallthru
      _
  $region6: #{_lambda_.1} parent=0 // loop_footer
    %s15 = sadd.s32 1, %s11
  $region7: #{_lambda_.1} parent=0 // loop_footer_branch
    %10 = sbr.rel target = $region3
  $region8: #{_lambda_.1} parent=0 // loop_exit
    _

</llo_original>
